<compile_context>
chip_gen: v5e
topology: v5e:2x2
jax: 0.10.0
libtpu: 0.0.40
codegen_flags: <defaults>
</compile_context>

<pallas_src>
import jax
import jax.numpy as jnp
from jax import lax
from jax.experimental import pallas as pl
from jax.experimental.pallas import tpu as pltpu


def _normal_loss_kernel_smooth(pred_ref, values_ref, jitter_ref, mask_ref,
                               out_ref, mse_acc, l1_acc, cnt_acc):
    """pred/values/jitter: (3, TR, 128); mask: (TR, 128); out: (1, 8, 128)."""
    i = pl.program_id(1)

    @pl.when(i == 0)
    def _init():
        mse_acc[...] = jnp.zeros_like(mse_acc)
        l1_acc[...] = jnp.zeros_like(l1_acc)
        cnt_acc[...] = jnp.zeros_like(cnt_acc)

    m = mask_ref[...].astype(jnp.float32)            # (TR, 128) {0,1}
    px = pred_ref[0].astype(jnp.float32)
    py = pred_ref[1].astype(jnp.float32)
    pz = pred_ref[2].astype(jnp.float32)
    vx = values_ref[0].astype(jnp.float32)
    vy = values_ref[1].astype(jnp.float32)
    vz = values_ref[2].astype(jnp.float32)
    jx = jitter_ref[0].astype(jnp.float32)
    jy = jitter_ref[1].astype(jnp.float32)
    jz = jitter_ref[2].astype(jnp.float32)

    # F.normalize(v, dim=-1) = v / max(||v||, 1e-12) = v * rsqrt(max(||v||^2, 1e-24))
    inv = lax.rsqrt(jnp.maximum(vx * vx + vy * vy + vz * vz, 1e-24))
    dx = px - vx * inv
    dy = py - vy * inv
    dz = pz - vz * inv

    # Hot loop: elementwise VPU adds only; cross-lane reduce deferred to the end.
    mse_acc[...] += m * (dx * dx + dy * dy + dz * dz)
    l1_acc[...] += m * (jnp.abs(px - jx) + jnp.abs(py - jy) + jnp.abs(pz - jz))
    cnt_acc[...] += m

    @pl.when(i == pl.num_programs(1) - 1)
    def _final():
        lanes = lax.broadcasted_iota(jnp.int32, (8, 128), 1)
        mse_s = jnp.sum(mse_acc[...])
        l1_s = jnp.sum(l1_acc[...])
        cnt_s = jnp.sum(cnt_acc[...])
        out_ref[0] = jnp.where(
            lanes == 0, mse_s,
            jnp.where(lanes == 1, l1_s,
                      jnp.where(lanes == 2, cnt_s, 0.0)))


def _normal_loss_kernel(pred_ref, values_ref, mask_ref,
                        out_ref, mse_acc, cnt_acc):
    """No-jitter fast path: no L1 stream / accumulator."""
    i = pl.program_id(1)

    @pl.when(i == 0)
    def _init():
        mse_acc[...] = jnp.zeros_like(mse_acc)
        cnt_acc[...] = jnp.zeros_like(cnt_acc)

    m = mask_ref[...].astype(jnp.float32)
    px = pred_ref[0].astype(jnp.float32)
    py = pred_ref[1].astype(jnp.float32)
    pz = pred_ref[2].astype(jnp.float32)
    vx = values_ref[0].astype(jnp.float32)
    vy = values_ref[1].astype(jnp.float32)
    vz = values_ref[2].astype(jnp.float32)

    inv = lax.rsqrt(jnp.maximum(vx * vx + vy * vy + vz * vz, 1e-24))
    dx = px - vx * inv
    dy = py - vy * inv
    dz = pz - vz * inv

    mse_acc[...] += m * (dx * dx + dy * dy + dz * dz)
    cnt_acc[...] += m

    @pl.when(i == pl.num_programs(1) - 1)
    def _final():
        lanes = lax.broadcasted_iota(jnp.int32, (8, 128), 1)
        mse_s = jnp.sum(mse_acc[...])
        cnt_s = jnp.sum(cnt_acc[...])
        out_ref[0] = jnp.where(
            lanes == 0, mse_s,
            jnp.where(lanes == 2, cnt_s, 0.0))


def _masked_sums(pred, values, mask_bool, jitter=None, max_tile_rows=512):
    """Returns (masked MSE-numerator sum, masked L1-numerator sum, mask count)."""
    n = pred.shape[0]
    lane = 128
    row_gran = 32                      # safe sublane granularity for any dtype
    rows = pl.cdiv(n, lane)
    rows = pl.cdiv(rows, row_gran) * row_gran
    tile_rows = min(max_tile_rows, rows)
    rows = pl.cdiv(rows, 2 * tile_rows) * (2 * tile_rows)
    n_pad = rows * lane
    inner = rows // (2 * tile_rows)

    def to_planes(x):                  # (N, 3) -> (3, rows, 128) component planes
        x = jnp.pad(x, ((0, n_pad - n), (0, 0)))
        return x.T.reshape(3, rows, lane)

    pred_p = to_planes(pred)
    values_p = to_planes(values)
    mask_f = jnp.pad(mask_bool.astype(jnp.float32), (0, n_pad - n)).reshape(rows, lane)

    comp_spec = pl.BlockSpec((3, tile_rows, lane),
                             lambda c, i: (0, c * inner + i, 0))
    mask_spec = pl.BlockSpec((tile_rows, lane),
                             lambda c, i: (c * inner + i, 0))
    out_spec = pl.BlockSpec((1, 8, lane), lambda c, i: (c, 0, 0))

    if jitter is not None:
        kernel = _normal_loss_kernel_smooth
        in_specs = [comp_spec, comp_spec, comp_spec, mask_spec]
        operands = (pred_p, values_p, to_planes(jitter), mask_f)
        scratch = [pltpu.VMEM((tile_rows, lane), jnp.float32)] * 3
    else:
        kernel = _normal_loss_kernel
        in_specs = [comp_spec, comp_spec, mask_spec]
        operands = (pred_p, values_p, mask_f)
        scratch = [pltpu.VMEM((tile_rows, lane), jnp.float32)] * 2

    out = pl.pallas_call(
        kernel,
        out_shape=jax.ShapeDtypeStruct((2, 8, lane), jnp.float32),
        grid=(2, inner),
        in_specs=in_specs,
        out_specs=out_spec,
        scratch_shapes=scratch,
        compiler_params=pltpu.CompilerParams(
            dimension_semantics=("parallel", "arbitrary"),
            vmem_limit_bytes=32 * 1024 * 1024),
    )(*operands)

    sums = jnp.sum(out[:, 0, :], axis=0)      # combine the two core halves
    return sums[0], sums[1], sums[2]


class NormalLoss:
    """JAX/Pallas port of stage2.model.loss.NormalLoss (no learnable params)."""

    def __init__(self, normal_weight, normal_smooth_weight=0):
        self.normal_weight = float(normal_weight)
        self.normal_smooth_weight = float(normal_smooth_weight)

    def __call__(self, model_outputs):
        pred = model_outputs['normal_pred']
        values = model_outputs['normal_values']
        mask = (model_outputs['network_object_mask'].astype(bool)
                & model_outputs['object_mask'].astype(bool))
        has_jitter = ('normal_jitter' in model_outputs
                      and self.normal_smooth_weight > 0)
        jitter = model_outputs['normal_jitter'] if has_jitter else None

        mse_sum, l1_sum, cnt = _masked_sums(pred, values, mask, jitter)

        # MSELoss / L1Loss with reduction='mean' over the (M, 3) masked rows.
        denom = jnp.maximum(cnt * 3.0, 1.0)
        norm_loss = jnp.where(cnt > 0, mse_sum / denom, 0.0)
        loss = self.normal_weight * norm_loss

        normal_smooth_loss = None
        if has_jitter:
            normal_smooth_loss = jnp.where(cnt > 0, l1_sum / denom, 0.0)
            loss = loss + self.normal_smooth_weight * normal_smooth_loss

        return {'loss': loss,
                'normal_loss': norm_loss,
                'normal_smooth_loss': normal_smooth_loss}


def _reference(model_outputs, normal_weight, normal_smooth_weight):
    """Pure-JAX reference mirroring the PyTorch forward."""
    values = model_outputs['normal_values'].astype(jnp.float32)
    pred = model_outputs['normal_pred'].astype(jnp.float32)
    jitter = model_outputs['normal_jitter'].astype(jnp.float32)
    mask = (model_outputs['network_object_mask']
            & model_outputs['object_mask']).astype(jnp.float32)[:, None]
    nrm = jnp.sqrt(jnp.sum(values * values, axis=-1, keepdims=True))
    gt = values / jnp.maximum(nrm, 1e-12)
    cnt = jnp.sum(mask)
    denom = jnp.maximum(cnt * 3.0, 1.0)
    norm_loss = jnp.where(cnt > 0, jnp.sum(mask * (pred - gt) ** 2) / denom, 0.0)
    smooth = jnp.where(cnt > 0, jnp.sum(mask * jnp.abs(pred - jitter)) / denom, 0.0)
    return normal_weight * norm_loss + normal_smooth_weight * smooth, norm_loss, smooth


if __name__ == "__main__":
    key = jax.random.PRNGKey(0)
    k1, k2, k3, k4, k5 = jax.random.split(key, 5)

    N = 3000  # not a multiple of 128 -> exercises the padding path
    model_outputs = {
        'normal_pred': jax.random.normal(k1, (N, 3), dtype=jnp.float32),
        'normal_values': jax.random.normal(k2, (N, 3), dtype=jnp.float32),
        'normal_jitter': jax.random.normal(k3, (N, 3), dtype=jnp.float32),
        'network_object_mask': jax.random.bernoulli(k4, 0.7, (N,)),
        'object_mask': jax.random.bernoulli(k5, 0.7, (N,)),
    }

    # Smooth path (jitter present, normal_smooth_weight > 0).
    loss_fn = NormalLoss(normal_weight=1.0, normal_smooth_weight=0.1)
    out = loss_fn(model_outputs)
    jax.block_until_ready(out['loss'])

    ref_loss, ref_norm, ref_smooth = _reference(model_outputs, 1.0, 0.1)
    assert jnp.allclose(out['loss'], ref_loss, atol=1e-4, rtol=1e-4)
    assert jnp.allclose(out['normal_loss'], ref_norm, atol=1e-4, rtol=1e-4)
    assert jnp.allclose(out['normal_smooth_loss'], ref_smooth, atol=1e-4, rtol=1e-4)

    # No-jitter fast path (normal_smooth_weight == 0): no jitter DMA stream.
    loss_fn0 = NormalLoss(normal_weight=1.0, normal_smooth_weight=0.0)
    out0 = loss_fn0(model_outputs)
    jax.block_until_ready(out0['loss'])

    ref_loss0, ref_norm0, _ = _reference(model_outputs, 1.0, 0.0)
    assert jnp.allclose(out0['loss'], ref_loss0, atol=1e-4, rtol=1e-4)
    assert jnp.allclose(out0['normal_loss'], ref_norm0, atol=1e-4, rtol=1e-4)
    assert out0['normal_smooth_loss'] is None

    print("KERNEL_OK")
</pallas_src>

<mosaic_0001>
module attributes {stable_mosaic.version = 11 : i64} {
  func.func @_normal_loss_kernel_smooth(%arg0: i32, %arg1: i32, %arg2: memref<3x32x128xf32, #tpu.memory_space<vmem>>, %arg3: memref<3x32x128xf32, #tpu.memory_space<vmem>>, %arg4: memref<3x32x128xf32, #tpu.memory_space<vmem>>, %arg5: memref<32x128xf32, #tpu.memory_space<vmem>>, %arg6: memref<1x8x128xf32, #tpu.memory_space<vmem>>, %arg7: memref<32x128xf32, #tpu.memory_space<vmem>>, %arg8: memref<32x128xf32, #tpu.memory_space<vmem>>, %arg9: memref<32x128xf32, #tpu.memory_space<vmem>>) attributes {dimension_semantics = [#tpu.dimension_semantics<parallel>, #tpu.dimension_semantics<arbitrary>], iteration_bounds = array<i64: 2, 1>, scalar_prefetch = 0 : i64, scratch_operands = 3 : i64, tpu.core_type = #tpu.core_type<tc>, window_params = [{transform_indices = @transform_0, window_bounds = array<i64: 3, 32, 128>}, {transform_indices = @transform_1, window_bounds = array<i64: 3, 32, 128>}, {transform_indices = @transform_2, window_bounds = array<i64: 3, 32, 128>}, {transform_indices = @transform_3, window_bounds = array<i64: 32, 128>}, {transform_indices = @transform_4, window_bounds = array<i64: 1, 8, 128>}]} {
    %c0_i32 = arith.constant 0 : i32
    %0 = arith.cmpi eq, %arg1, %c0_i32 : i32
    %1 = arith.extui %0 : i1 to i32
    %c0_i32_0 = arith.constant 0 : i32
    %2 = arith.cmpi ne, %1, %c0_i32_0 : i32
    scf.if %2 {
      %cst_41 = arith.constant 0.000000e+00 : f32
      %63 = vector.broadcast %cst_41 : f32 to vector<32x128xf32>
      %c0_42 = arith.constant 0 : index
      %c0_43 = arith.constant 0 : index
      %64 = vector.load %arg7[%c0_42, %c0_43] : memref<32x128xf32, #tpu.memory_space<vmem>>, vector<32x128xf32>
      tpu.vector_store %arg7[%c0_42, %c0_43], %63 {strides = array<i32>} : memref<32x128xf32, #tpu.memory_space<vmem>>, vector<32x128xf32>,
      %cst_44 = arith.constant 0.000000e+00 : f32
      %65 = vector.broadcast %cst_44 : f32 to vector<32x128xf32>
      %c0_45 = arith.constant 0 : index
      %c0_46 = arith.constant 0 : index
      %66 = vector.load %arg8[%c0_45, %c0_46] : memref<32x128xf32, #tpu.memory_space<vmem>>, vector<32x128xf32>
      tpu.vector_store %arg8[%c0_45, %c0_46], %65 {strides = array<i32>} : memref<32x128xf32, #tpu.memory_space<vmem>>, vector<32x128xf32>,
      %cst_47 = arith.constant 0.000000e+00 : f32
      %67 = vector.broadcast %cst_47 : f32 to vector<32x128xf32>
      %c0_48 = arith.constant 0 : index
      %c0_49 = arith.constant 0 : index
      %68 = vector.load %arg9[%c0_48, %c0_49] : memref<32x128xf32, #tpu.memory_space<vmem>>, vector<32x128xf32>
      tpu.vector_store %arg9[%c0_48, %c0_49], %67 {strides = array<i32>} : memref<32x128xf32, #tpu.memory_space<vmem>>, vector<32x128xf32>,
    } else {
    }
    %c0 = arith.constant 0 : index
    %c0_1 = arith.constant 0 : index
    %3 = vector.load %arg5[%c0, %c0_1] : memref<32x128xf32, #tpu.memory_space<vmem>>, vector<32x128xf32>
    %c0_2 = arith.constant 0 : index
    %c0_3 = arith.constant 0 : index
    %c0_4 = arith.constant 0 : index
    %4 = vector.load %arg2[%c0_2, %c0_3, %c0_4] : memref<3x32x128xf32, #tpu.memory_space<vmem>>, vector<1x32x128xf32>
    %5 = vector.shape_cast %4 : vector<1x32x128xf32> to vector<32x128xf32>
    %c1 = arith.constant 1 : index
    %c0_5 = arith.constant 0 : index
    %c0_6 = arith.constant 0 : index
    %6 = vector.load %arg2[%c1, %c0_5, %c0_6] : memref<3x32x128xf32, #tpu.memory_space<vmem>>, vector<1x32x128xf32>
    %7 = vector.shape_cast %6 : vector<1x32x128xf32> to vector<32x128xf32>
    %c2 = arith.constant 2 : index
    %c0_7 = arith.constant 0 : index
    %c0_8 = arith.constant 0 : index
    %8 = vector.load %arg2[%c2, %c0_7, %c0_8] : memref<3x32x128xf32, #tpu.memory_space<vmem>>, vector<1x32x128xf32>
    %9 = vector.shape_cast %8 : vector<1x32x128xf32> to vector<32x128xf32>
    %c0_9 = arith.constant 0 : index
    %c0_10 = arith.constant 0 : index
    %c0_11 = arith.constant 0 : index
    %10 = vector.load %arg3[%c0_9, %c0_10, %c0_11] : memref<3x32x128xf32, #tpu.memory_space<vmem>>, vector<1x32x128xf32>
    %11 = vector.shape_cast %10 : vector<1x32x128xf32> to vector<32x128xf32>
    %c1_12 = arith.constant 1 : index
    %c0_13 = arith.constant 0 : index
    %c0_14 = arith.constant 0 : index
    %12 = vector.load %arg3[%c1_12, %c0_13, %c0_14] : memref<3x32x128xf32, #tpu.memory_space<vmem>>, vector<1x32x128xf32>
    %13 = vector.shape_cast %12 : vector<1x32x128xf32> to vector<32x128xf32>
    %c2_15 = arith.constant 2 : index
    %c0_16 = arith.constant 0 : index
    %c0_17 = arith.constant 0 : index
    %14 = vector.load %arg3[%c2_15, %c0_16, %c0_17] : memref<3x32x128xf32, #tpu.memory_space<vmem>>, vector<1x32x128xf32>
    %15 = vector.shape_cast %14 : vector<1x32x128xf32> to vector<32x128xf32>
    %c0_18 = arith.constant 0 : index
    %c0_19 = arith.constant 0 : index
    %c0_20 = arith.constant 0 : index
    %16 = vector.load %arg4[%c0_18, %c0_19, %c0_20] : memref<3x32x128xf32, #tpu.memory_space<vmem>>, vector<1x32x128xf32>
    %17 = vector.shape_cast %16 : vector<1x32x128xf32> to vector<32x128xf32>
    %c1_21 = arith.constant 1 : index
    %c0_22 = arith.constant 0 : index
    %c0_23 = arith.constant 0 : index
    %18 = vector.load %arg4[%c1_21, %c0_22, %c0_23] : memref<3x32x128xf32, #tpu.memory_space<vmem>>, vector<1x32x128xf32>
    %19 = vector.shape_cast %18 : vector<1x32x128xf32> to vector<32x128xf32>
    %c2_24 = arith.constant 2 : index
    %c0_25 = arith.constant 0 : index
    %c0_26 = arith.constant 0 : index
    %20 = vector.load %arg4[%c2_24, %c0_25, %c0_26] : memref<3x32x128xf32, #tpu.memory_space<vmem>>, vector<1x32x128xf32>
    %21 = vector.shape_cast %20 : vector<1x32x128xf32> to vector<32x128xf32>
    %22 = arith.mulf %11, %11 : vector<32x128xf32>
    %23 = arith.mulf %13, %13 : vector<32x128xf32>
    %24 = arith.addf %22, %23 : vector<32x128xf32>
    %25 = arith.mulf %15, %15 : vector<32x128xf32>
    %26 = arith.addf %24, %25 : vector<32x128xf32>
    %cst = arith.constant 1.000000e-24 : f32
    %27 = vector.broadcast %cst : f32 to vector<32x128xf32>
    %28 = arith.maximumf %26, %27 : vector<32x128xf32>
    %29 = math.rsqrt %28 : vector<32x128xf32>
    %30 = arith.mulf %11, %29 : vector<32x128xf32>
    %31 = arith.subf %5, %30 : vector<32x128xf32>
    %32 = arith.mulf %13, %29 : vector<32x128xf32>
    %33 = arith.subf %7, %32 : vector<32x128xf32>
    %34 = arith.mulf %15, %29 : vector<32x128xf32>
    %35 = arith.subf %9, %34 : vector<32x128xf32>
    %c0_27 = arith.constant 0 : index
    %c0_28 = arith.constant 0 : index
    %36 = vector.load %arg7[%c0_27, %c0_28] : memref<32x128xf32, #tpu.memory_space<vmem>>, vector<32x128xf32>
    %37 = arith.mulf %31, %31 : vector<32x128xf32>
    %38 = arith.mulf %33, %33 : vector<32x128xf32>
    %39 = arith.addf %37, %38 : vector<32x128xf32>
    %40 = arith.mulf %35, %35 : vector<32x128xf32>
    %41 = arith.addf %39, %40 : vector<32x128xf32>
    %42 = arith.mulf %3, %41 : vector<32x128xf32>
    %43 = arith.addf %36, %42 : vector<32x128xf32>
    %c0_29 = arith.constant 0 : index
    %c0_30 = arith.constant 0 : index
    %44 = vector.load %arg7[%c0_29, %c0_30] : memref<32x128xf32, #tpu.memory_space<vmem>>, vector<32x128xf32>
    tpu.vector_store %arg7[%c0_29, %c0_30], %43 {strides = array<i32>} : memref<32x128xf32, #tpu.memory_space<vmem>>, vector<32x128xf32>,
    %c0_31 = arith.constant 0 : index
    %c0_32 = arith.constant 0 : index
    %45 = vector.load %arg8[%c0_31, %c0_32] : memref<32x128xf32, #tpu.memory_space<vmem>>, vector<32x128xf32>
    %46 = arith.subf %5, %17 : vector<32x128xf32>
    %47 = math.absf %46 : vector<32x128xf32>
    %48 = arith.subf %7, %19 : vector<32x128xf32>
    %49 = math.absf %48 : vector<32x128xf32>
    %50 = arith.addf %47, %49 : vector<32x128xf32>
    %51 = arith.subf %9, %21 : vector<32x128xf32>
    %52 = math.absf %51 : vector<32x128xf32>
    %53 = arith.addf %50, %52 : vector<32x128xf32>
    %54 = arith.mulf %3, %53 : vector<32x128xf32>
    %55 = arith.addf %45, %54 : vector<32x128xf32>
    %c0_33 = arith.constant 0 : index
    %c0_34 = arith.constant 0 : index
    %56 = vector.load %arg8[%c0_33, %c0_34] : memref<32x128xf32, #tpu.memory_space<vmem>>, vector<32x128xf32>
    tpu.vector_store %arg8[%c0_33, %c0_34], %55 {strides = array<i32>} : memref<32x128xf32, #tpu.memory_space<vmem>>, vector<32x128xf32>,
    %c0_35 = arith.constant 0 : index
    %c0_36 = arith.constant 0 : index
    %57 = vector.load %arg9[%c0_35, %c0_36] : memref<32x128xf32, #tpu.memory_space<vmem>>, vector<32x128xf32>
    %58 = arith.addf %57, %3 : vector<32x128xf32>
    %c0_37 = arith.constant 0 : index
    %c0_38 = arith.constant 0 : index
    %59 = vector.load %arg9[%c0_37, %c0_38] : memref<32x128xf32, #tpu.memory_space<vmem>>, vector<32x128xf32>
    tpu.vector_store %arg9[%c0_37, %c0_38], %58 {strides = array<i32>} : memref<32x128xf32, #tpu.memory_space<vmem>>, vector<32x128xf32>,
    %c0_i32_39 = arith.constant 0 : i32
    %60 = arith.cmpi eq, %arg1, %c0_i32_39 : i32
    %61 = arith.extui %60 : i1 to i32
    %c0_i32_40 = arith.constant 0 : i32
    %62 = arith.cmpi ne, %61, %c0_i32_40 : i32
    scf.if %62 {
      %63 = tpu.iota {dimensions = array<i32: 1>} : vector<8x128xi32>
      %c0_41 = arith.constant 0 : index
      %c0_42 = arith.constant 0 : index
      %64 = vector.load %arg7[%c0_41, %c0_42] : memref<32x128xf32, #tpu.memory_space<vmem>>, vector<32x128xf32>
      %65 = vector.shape_cast %64 : vector<32x128xf32> to vector<1x32x128xf32>
      %cst_43 = arith.constant dense<0.000000e+00> : vector<1xf32>
      %66 = vector.multi_reduction <add>, %65, %cst_43 [1, 2] : vector<1x32x128xf32> to vector<1xf32>
      %67 = vector.shape_cast %66 : vector<1xf32> to vector<1x1x1xf32>
      %68 = vector.extract %67[0, 0, 0] : f32 from vector<1x1x1xf32>
      %c0_44 = arith.constant 0 : index
      %c0_45 = arith.constant 0 : index
      %69 = vector.load %arg8[%c0_44, %c0_45] : memref<32x128xf32, #tpu.memory_space<vmem>>, vector<32x128xf32>
      %70 = vector.shape_cast %69 : vector<32x128xf32> to vector<1x32x128xf32>
      %cst_46 = arith.constant dense<0.000000e+00> : vector<1xf32>
      %71 = vector.multi_reduction <add>, %70, %cst_46 [1, 2] : vector<1x32x128xf32> to vector<1xf32>
      %72 = vector.shape_cast %71 : vector<1xf32> to vector<1x1x1xf32>
      %73 = vector.extract %72[0, 0, 0] : f32 from vector<1x1x1xf32>
      %c0_47 = arith.constant 0 : index
      %c0_48 = arith.constant 0 : index
      %74 = vector.load %arg9[%c0_47, %c0_48] : memref<32x128xf32, #tpu.memory_space<vmem>>, vector<32x128xf32>
      %75 = vector.shape_cast %74 : vector<32x128xf32> to vector<1x32x128xf32>
      %cst_49 = arith.constant dense<0.000000e+00> : vector<1xf32>
      %76 = vector.multi_reduction <add>, %75, %cst_49 [1, 2] : vector<1x32x128xf32> to vector<1xf32>
      %77 = vector.shape_cast %76 : vector<1xf32> to vector<1x1x1xf32>
      %78 = vector.extract %77[0, 0, 0] : f32 from vector<1x1x1xf32>
      %c0_i32_50 = arith.constant 0 : i32
      %79 = vector.broadcast %c0_i32_50 : i32 to vector<8x128xi32>
      %80 = arith.cmpi eq, %63, %79 : vector<8x128xi32>
      %c1_i32 = arith.constant 1 : i32
      %81 = vector.broadcast %c1_i32 : i32 to vector<8x128xi32>
      %82 = arith.cmpi eq, %63, %81 : vector<8x128xi32>
      %c2_i32 = arith.constant 2 : i32
      %83 = vector.broadcast %c2_i32 : i32 to vector<8x128xi32>
      %84 = arith.cmpi eq, %63, %83 : vector<8x128xi32>
      %cst_51 = arith.constant 0.000000e+00 : f32
      %85 = vector.broadcast %78 : f32 to vector<8x128xf32>
      %86 = vector.broadcast %cst_51 : f32 to vector<8x128xf32>
      %87 = arith.select %84, %85, %86 : vector<8x128xi1>, vector<8x128xf32>
      %88 = vector.broadcast %73 : f32 to vector<8x128xf32>
      %89 = arith.select %82, %88, %87 : vector<8x128xi1>, vector<8x128xf32>
      %90 = vector.broadcast %68 : f32 to vector<8x128xf32>
      %91 = arith.select %80, %90, %89 : vector<8x128xi1>, vector<8x128xf32>
      %c0_52 = arith.constant 0 : index
      %c0_53 = arith.constant 0 : index
      %c0_54 = arith.constant 0 : index
      %92 = vector.load %arg6[%c0_52, %c0_53, %c0_54] : memref<1x8x128xf32, #tpu.memory_space<vmem>>, vector<1x8x128xf32>
      %93 = vector.shape_cast %92 : vector<1x8x128xf32> to vector<8x128xf32>
      %94 = vector.shape_cast %91 : vector<8x128xf32> to vector<1x8x128xf32>
      tpu.vector_store %arg6[%c0_52, %c0_53, %c0_54], %94 {strides = array<i32>} : memref<1x8x128xf32, #tpu.memory_space<vmem>>, vector<1x8x128xf32>,
    } else {
    }
    return
  }
  func.func @transform_0(%arg0: i32, %arg1: i32) -> (i32, i32, i32) {
    %c1_i32 = arith.constant 1 : i32
    %0 = arith.muli %arg0, %c1_i32 : i32
    %1 = arith.addi %0, %arg1 : i32
    %c0_i32 = arith.constant 0 : i32
    %c0_i32_0 = arith.constant 0 : i32
    %c0_i32_1 = arith.constant 0 : i32
    return %c0_i32, %1, %c0_i32_0 : i32, i32, i32
  }
  func.func @transform_1(%arg0: i32, %arg1: i32) -> (i32, i32, i32) {
    %c1_i32 = arith.constant 1 : i32
    %0 = arith.muli %arg0, %c1_i32 : i32
    %1 = arith.addi %0, %arg1 : i32
    %c0_i32 = arith.constant 0 : i32
    %c0_i32_0 = arith.constant 0 : i32
    %c0_i32_1 = arith.constant 0 : i32
    return %c0_i32, %1, %c0_i32_0 : i32, i32, i32
  }
  func.func @transform_2(%arg0: i32, %arg1: i32) -> (i32, i32, i32) {
    %c1_i32 = arith.constant 1 : i32
    %0 = arith.muli %arg0, %c1_i32 : i32
    %1 = arith.addi %0, %arg1 : i32
    %c0_i32 = arith.constant 0 : i32
    %c0_i32_0 = arith.constant 0 : i32
    %c0_i32_1 = arith.constant 0 : i32
    return %c0_i32, %1, %c0_i32_0 : i32, i32, i32
  }
  func.func @transform_3(%arg0: i32, %arg1: i32) -> (i32, i32) {
    %c1_i32 = arith.constant 1 : i32
    %0 = arith.muli %arg0, %c1_i32 : i32
    %1 = arith.addi %0, %arg1 : i32
    %c0_i32 = arith.constant 0 : i32
    %c0_i32_0 = arith.constant 0 : i32
    return %1, %c0_i32 : i32, i32
  }
  func.func @transform_4(%arg0: i32, %arg1: i32) -> (i32, i32, i32) {
    %c0_i32 = arith.constant 0 : i32
    %c0_i32_0 = arith.constant 0 : i32
    %c0_i32_1 = arith.constant 0 : i32
    return %arg0, %c0_i32, %c0_i32_0 : i32, i32, i32
  }
}

</mosaic_0001>

<llo_original>
// kernel: tpu_custom_call.1
$region0: #{tpu_custom_call.1}
  #allocation0 [shape = 'u32[]', space=smem, size = 0x4, offset = 0x4, fixed_abs, tag = 'smem constant byte address 0x4 - core index']
  #allocation1 [shape = 'u32[72,128]{1,0:T(1,128)}', space=vmem, size = 0x9000, scoped, tag = 'internal scratch']
  #allocation2 [shape = 'f32[32,128]{1,0:T(8,128)}', space=vmem, size = 0x4000, scoped, tag = 'scratch operand']
  #allocation3 [shape = 'f32[32,128]{1,0:T(8,128)}', space=vmem, size = 0x4000, scoped, tag = 'scratch operand']
  #allocation4 [shape = 'f32[32,128]{1,0:T(8,128)}', space=vmem, size = 0x4000, scoped, tag = 'scratch operand']
  #allocation14 [shape = 's32[]', space=sflag, size = 0x4, offset = 0, fixed_abs, tag = 'sflag constant byte address 0x0 - dummy sync flag']
  #allocation16 [shape = 's32[]', space=sflag, size = 0x4, offset = 0, fixed_abs, tag = 'sflag constant byte address 0x0 - dummy sync flag']
  #allocation18 [shape = 's32[]', space=sflag, size = 0x4, offset = 0, fixed_abs, tag = 'sflag constant byte address 0x0 - dummy sync flag']
  %s0 = inlined_call_operand.hbm [shape: f32[3,64,128], index: 0, kind: input, shape index: {}]
  %s1 = inlined_call_operand.hbm [shape: f32[3,64,128], index: 1, kind: input, shape index: {}]
  %s2 = inlined_call_operand.hbm [shape: f32[3,64,128], index: 2, kind: input, shape index: {}]
  %s3 = inlined_call_operand.hbm [shape: f32[64,128], index: 3, kind: input, shape index: {}]
  %s4 = inlined_call_operand.hbm [shape: f32[2,8,128], index: 4, kind: output, shape index: {}]
  %s5 = sld [smem:[#allocation0]]
  $region73: #{tpu_custom_call.1} parent=0
    _
  %s7 = ssub.s32 1, %s5
  %s8 = scalar_select 0, %s7, %s5
  $region1: #{tpu_custom_call.1} parent=0
    #allocation5 [shape = 'u8[98304]{0}', space=vmem, size = 0x18000, scoped, tag = 'input window, operand 0']
    #allocation6 [shape = 's32[2]{0}', space=sflag, size = 0x8, scoped, tag = 'scoped memory for tpu_custom_call.1']
    #allocation7 [shape = 's32[2]{0}', space=sflag, size = 0x8, scoped, tag = 'scoped memory for tpu_custom_call.1']
    #allocation8 [shape = 'u8[98304]{0}', space=vmem, size = 0x18000, scoped, tag = 'input window, operand 1']
    #allocation9 [shape = 's32[2]{0}', space=sflag, size = 0x8, scoped, tag = 'scoped memory for tpu_custom_call.1']
    #allocation10 [shape = 'u8[98304]{0}', space=vmem, size = 0x18000, scoped, tag = 'input window, operand 2']
    #allocation11 [shape = 'u8[32768]{0}', space=vmem, size = 0x8000, scoped, tag = 'input window, operand 3']
    #allocation12 [shape = 's32[2]{0}', space=sflag, size = 0x8, scoped, tag = 'scoped memory for tpu_custom_call.1']
    #allocation13 [shape = 'u8[8192]{0}', space=vmem, size = 0x2000, scoped, tag = 'output window, operand 0']
    %9 = vsyncpa [#allocation6], 0
    %s10 = scalar_lea.sflag [#allocation6], 1
    %11 = vsyncpa %s10, 0
    %12 = vsyncpa [#allocation9], 0
    %s13 = scalar_lea.sflag [#allocation9], 1
    %14 = vsyncpa %s13, 0
    %15 = vsyncpa [#allocation12], 0
    %s16 = scalar_lea.sflag [#allocation12], 1
    %17 = vsyncpa %s16, 0
    %18 = vsyncpa [#allocation7], 0
    %s19 = scalar_lea.sflag [#allocation7], 1
    %20 = vsyncpa %s19, 0
    loop: start=0, step=1, limit=4
    $region2: #{tpu_custom_call.1} parent=1 // loop_pre_header
      _
    $region3: #{tpu_custom_call.1} parent=1 // loop_header
      %s22 = sphi 0, %s26
      %p23 = scmp.ge.s32.totalorder %s22, 4
      %s29 = sphi 0, %s41
      %s30 = sphi 0, %s37
      %s31 = sphi 0, %s29
      %s32 = sphi 0, %s30
      %s33 = sphi 0, %s31
      %s34 = sphi 0, %s32
      %s46 = sphi 0, %s48
      %s49 = sphi 0, %s46
      %s50 = sphi 0, %s49
      %s66 = sphi 0, %s50
      %s74 = sphi 0, %s76
      %s77 = sphi 0, %s74
      %s78 = sphi 0, %s77
      %s94 = sphi 0, %s78
      %s102 = sphi 0, %s104
      %s105 = sphi 0, %s102
      %s106 = sphi 0, %s105
      %s122 = sphi 0, %s106
      %s130 = sphi 0, %s132
      %s133 = sphi 0, %s130
      %s134 = sphi 0, %s133
      %s150 = sphi 0, %s134
      %s156 = sphi 0, %s158
      %s159 = sphi 0, %s156
      %s160 = sphi 0, %s159
      %s176 = sphi 0, %s160
    $region4: #{tpu_custom_call.1} parent=1 // loop_header_branch
      %25 = sbr.rel (%p23) target = $region8
    $region5: #{tpu_custom_call.1} parent=1 // loop_body
      %s27 = ssub.s32 %s22, 1
      %s28 = ssub.s32 %s22, 2
      %s35 = sadd.s32 1, %s30
      %p36 = scmp.ge.s32.totalorder %s35, 1
      %s37 = scalar_select %p36, 0, %s35
      %s38 = sadd.s32 1, %s29
      %s39 = scalar_select %p36, %s38, %s29
      %p40 = scmp.ge.s32.totalorder %s39, 2
      %s41 = scalar_select %p40, 0, %s39
      %s42 = sadd.s32 %s29, %s30
      %s43 = sadd.s32 %s41, %s37
      %s44 = ssub.s32 %s42, %s43
      %p45 = scmp.eq.s32.totalorder %s44, 0
      %s47 = sadd.s32 %s46, 1
      %s48 = scalar_select %p45, %s46, %s47
      %p51 = pneg %p45
      %p52 = scmp.eq.s32.totalorder %s22, 1
      %p53 = por %p51, %p52
      %p54 = scmp.ne.s32.totalorder %s46, %s49
      %p55 = scmp.eq.s32.totalorder %s22, 0
      %p56 = por %p54, %p55
      %p57 = scmp.ne.s32.totalorder %s46, %s49
      %p58 = scmp.eq.s32.totalorder %s27, 1
      %p59 = por %p57, %p58
      %p60 = scmp.ne.s32.totalorder %s49, %s50
      %p61 = scmp.eq.s32.totalorder %s27, 0
      %p62 = por %p60, %p61
      %p63 = scmp.ne.s32.totalorder %s49, %s50
      %p64 = scmp.eq.s32.totalorder %s28, 1
      %p65 = por %p63, %p64
      %p67 = scmp.ne.s32.totalorder %s50, %s66
      %p68 = scmp.eq.s32.totalorder %s28, 0
      %p69 = por %p67, %p68
      %s70 = sadd.s32 %s29, %s30
      %s71 = sadd.s32 %s41, %s37
      %s72 = ssub.s32 %s70, %s71
      %p73 = scmp.eq.s32.totalorder %s72, 0
      %s75 = sadd.s32 %s74, 1
      %s76 = scalar_select %p73, %s74, %s75
      %p79 = pneg %p73
      %p80 = scmp.eq.s32.totalorder %s22, 1
      %p81 = por %p79, %p80
      %p82 = scmp.ne.s32.totalorder %s74, %s77
      %p83 = scmp.eq.s32.totalorder %s22, 0
      %p84 = por %p82, %p83
      %p85 = scmp.ne.s32.totalorder %s74, %s77
      %p86 = scmp.eq.s32.totalorder %s27, 1
      %p87 = por %p85, %p86
      %p88 = scmp.ne.s32.totalorder %s77, %s78
      %p89 = scmp.eq.s32.totalorder %s27, 0
      %p90 = por %p88, %p89
      %p91 = scmp.ne.s32.totalorder %s77, %s78
      %p92 = scmp.eq.s32.totalorder %s28, 1
      %p93 = por %p91, %p92
      %p95 = scmp.ne.s32.totalorder %s78, %s94
      %p96 = scmp.eq.s32.totalorder %s28, 0
      %p97 = por %p95, %p96
      %s98 = sadd.s32 %s29, %s30
      %s99 = sadd.s32 %s41, %s37
      %s100 = ssub.s32 %s98, %s99
      %p101 = scmp.eq.s32.totalorder %s100, 0
      %s103 = sadd.s32 %s102, 1
      %s104 = scalar_select %p101, %s102, %s103
      %p107 = pneg %p101
      %p108 = scmp.eq.s32.totalorder %s22, 1
      %p109 = por %p107, %p108
      %p110 = scmp.ne.s32.totalorder %s102, %s105
      %p111 = scmp.eq.s32.totalorder %s22, 0
      %p112 = por %p110, %p111
      %p113 = scmp.ne.s32.totalorder %s102, %s105
      %p114 = scmp.eq.s32.totalorder %s27, 1
      %p115 = por %p113, %p114
      %p116 = scmp.ne.s32.totalorder %s105, %s106
      %p117 = scmp.eq.s32.totalorder %s27, 0
      %p118 = por %p116, %p117
      %p119 = scmp.ne.s32.totalorder %s105, %s106
      %p120 = scmp.eq.s32.totalorder %s28, 1
      %p121 = por %p119, %p120
      %p123 = scmp.ne.s32.totalorder %s106, %s122
      %p124 = scmp.eq.s32.totalorder %s28, 0
      %p125 = por %p123, %p124
      %s126 = sadd.s32 %s29, %s30
      %s127 = sadd.s32 %s41, %s37
      %s128 = ssub.s32 %s126, %s127
      %p129 = scmp.eq.s32.totalorder %s128, 0
      %s131 = sadd.s32 %s130, 1
      %s132 = scalar_select %p129, %s130, %s131
      %p135 = pneg %p129
      %p136 = scmp.eq.s32.totalorder %s22, 1
      %p137 = por %p135, %p136
      %p138 = scmp.ne.s32.totalorder %s130, %s133
      %p139 = scmp.eq.s32.totalorder %s22, 0
      %p140 = por %p138, %p139
      %p141 = scmp.ne.s32.totalorder %s130, %s133
      %p142 = scmp.eq.s32.totalorder %s27, 1
      %p143 = por %p141, %p142
      %p144 = scmp.ne.s32.totalorder %s133, %s134
      %p145 = scmp.eq.s32.totalorder %s27, 0
      %p146 = por %p144, %p145
      %p147 = scmp.ne.s32.totalorder %s133, %s134
      %p148 = scmp.eq.s32.totalorder %s28, 1
      %p149 = por %p147, %p148
      %p151 = scmp.ne.s32.totalorder %s134, %s150
      %p152 = scmp.eq.s32.totalorder %s28, 0
      %p153 = por %p151, %p152
      %s154 = ssub.s32 %s29, %s41
      %p155 = scmp.eq.s32.totalorder %s154, 0
      %s157 = sadd.s32 %s156, 1
      %s158 = scalar_select %p155, %s156, %s157
      %p161 = pneg %p155
      %p162 = scmp.eq.s32.totalorder %s22, 1
      %p163 = por %p161, %p162
      %p164 = scmp.ne.s32.totalorder %s156, %s159
      %p165 = scmp.eq.s32.totalorder %s22, 0
      %p166 = por %p164, %p165
      %p167 = scmp.ne.s32.totalorder %s156, %s159
      %p168 = scmp.eq.s32.totalorder %s27, 1
      %p169 = por %p167, %p168
      %p170 = scmp.ne.s32.totalorder %s159, %s160
      %p171 = scmp.eq.s32.totalorder %s27, 0
      %p172 = por %p170, %p171
      %p173 = scmp.ne.s32.totalorder %s159, %s160
      %p174 = scmp.eq.s32.totalorder %s28, 1
      %p175 = por %p173, %p174
      %p177 = scmp.ne.s32.totalorder %s160, %s176
      %p178 = scmp.eq.s32.totalorder %s28, 0
      %p179 = por %p177, %p178
      %p180 = scmp.le.s32.totalorder 1, %s22
      %p181 = scmp.lt.s32.totalorder %s22, 3
      %p182 = pnand %p180, %p181
      %p183 = pneg %p182
      // Predicated region
      $region9: #{tpu_custom_call.1} parent=5 // pred_check
        _
      $region10: #{tpu_custom_call.1} parent=5 // pred_check_branch
        %185 = sbr.rel (%p182) target = $region12
      $region11: #{tpu_custom_call.1} parent=5 // pred_region
        %s186 = ssub.s32 %s22, 1
      $region12: #{tpu_custom_call.1} parent=5 // pred_fallthru
        _
      %p187 = scmp.lt.s32.totalorder %s22, 2
      // Predicated region
      $region13: #{tpu_custom_call.1} parent=5 // pred_check
        %p188 = pneg %p187
      $region14: #{tpu_custom_call.1} parent=5 // pred_check_branch
        %190 = sbr.rel (%p188) target = $region16
      $region15: #{tpu_custom_call.1} parent=5 // pred_region
        // Predicated region
        $region17: #{tpu_custom_call.1} parent=15 // pred_check
          %p191 = pneg %p56
        $region18: #{tpu_custom_call.1} parent=15 // pred_check_branch
          %193 = sbr.rel (%p191) target = $region20
        $region19: #{tpu_custom_call.1} parent=15 // pred_region
          #allocation15 [shape = 'u32[6]{0}', space=smem, size = 0x18, scoped, tag = 'DMA stride descriptor']
          %s194 = sand.u32 %s46, 1
          %s195 = scalar_lea.sflag [#allocation6], %s194
          %s196 = sand.u32 %s46, 1
          %s197 = smul.addr %s196, 96
          %s198 = scalar_lea.vmem [#allocation5], %s197
          %s199 = sadd.s32 %s29, %s30
          %s200 = smul.u32 4, %s199
          %202 = vsyncadd %s195, 0
          %s203 = smul.addr %s200, 8
          %s204 = scalar_lea.hbm %s0, %s203
          %s206 = sshll.u32 1, 14
          %s207 = sxor.u32 4294967295, %s206
          %s209 = sld [smem:[#allocation0]]
          %s210 = sadd.s32 2, %s209
          %s212 = sshll.u32 7, 26
          %s213 = sxor.u32 4294967295, %s212
          %s214 = sand.u32 0, %s213
          %s215 = sshll.u32 %s210, 26
          %s216 = sor.u32 %s214, %s215
          %s217 = sshll.u32 %s204, 4
          %s218 = int_to_ptr.hbm [resolvable:$true] %s217
          %s219 = sshll.u32 %s198, 4
          %s220 = int_to_ptr.vmem [resolvable:$true] %s219
          %226 = sst [smem:[#allocation15]] 1024
          %s227 = scalar_lea.smem [#allocation15], 1
          %228 = sst [smem:[%s227]] 512
          %s229 = scalar_lea.smem [#allocation15], 2
          %230 = sst [smem:[%s229]] 4
          %s231 = scalar_lea.smem [#allocation15], 3
          %232 = sst [smem:[%s231]] 128
          %s233 = scalar_lea.smem [#allocation15], 4
          %234 = sst [smem:[%s233]] 128
          %s235 = scalar_lea.smem [#allocation15], 5
          %236 = sst [smem:[%s235]] 8
          %238 = dma.general %s218, 1536, %s220, %s195, [#allocation14], [#allocation15], %s216, 0
        $region20: #{tpu_custom_call.1} parent=15 // pred_fallthru
          _
        // Predicated region
        $region21: #{tpu_custom_call.1} parent=15 // pred_check
          %p239 = pneg %p84
        $region22: #{tpu_custom_call.1} parent=15 // pred_check_branch
          %241 = sbr.rel (%p239) target = $region24
        $region23: #{tpu_custom_call.1} parent=15 // pred_region
          #allocation17 [shape = 'u32[6]{0}', space=smem, size = 0x18, scoped, tag = 'DMA stride descriptor']
          %s242 = sand.u32 %s22, 1
          %s243 = scalar_lea.sflag [#allocation9], %s242
          %s244 = sand.u32 %s74, 1
          %s245 = smul.addr %s244, 96
          %s246 = scalar_lea.vmem [#allocation8], %s245
          %s247 = sadd.s32 %s29, %s30
          %s248 = smul.u32 4, %s247
          %250 = vsyncadd %s243, 0
          %s251 = smul.addr %s248, 8
          %s252 = scalar_lea.hbm %s1, %s251
          %s254 = sshll.u32 1, 14
          %s255 = sxor.u32 4294967295, %s254
          %s257 = sld [smem:[#allocation0]]
          %s258 = sadd.s32 2, %s257
          %s260 = sshll.u32 7, 26
          %s261 = sxor.u32 4294967295, %s260
          %s262 = sand.u32 0, %s261
          %s263 = sshll.u32 %s258, 26
          %s264 = sor.u32 %s262, %s263
          %s265 = sshll.u32 %s252, 4
          %s266 = int_to_ptr.hbm [resolvable:$true] %s265
          %s267 = sshll.u32 %s246, 4
          %s268 = int_to_ptr.vmem [resolvable:$true] %s267
          %274 = sst [smem:[#allocation17]] 1024
          %s275 = scalar_lea.smem [#allocation17], 1
          %276 = sst [smem:[%s275]] 512
          %s277 = scalar_lea.smem [#allocation17], 2
          %278 = sst [smem:[%s277]] 4
          %s279 = scalar_lea.smem [#allocation17], 3
          %280 = sst [smem:[%s279]] 128
          %s281 = scalar_lea.smem [#allocation17], 4
          %282 = sst [smem:[%s281]] 128
          %s283 = scalar_lea.smem [#allocation17], 5
          %284 = sst [smem:[%s283]] 8
          %286 = dma.general %s266, 1536, %s268, %s243, [#allocation16], [#allocation17], %s264, 0
        $region24: #{tpu_custom_call.1} parent=15 // pred_fallthru
          _
        // Predicated region
        $region25: #{tpu_custom_call.1} parent=15 // pred_check
          %p287 = pneg %p112
        $region26: #{tpu_custom_call.1} parent=15 // pred_check_branch
          %289 = sbr.rel (%p287) target = $region28
        $region27: #{tpu_custom_call.1} parent=15 // pred_region
          #allocation19 [shape = 'u32[6]{0}', space=smem, size = 0x18, scoped, tag = 'DMA stride descriptor']
          %s290 = sand.u32 %s22, 1
          %s291 = scalar_lea.sflag [#allocation9], %s290
          %s292 = sand.u32 %s102, 1
          %s293 = smul.addr %s292, 96
          %s294 = scalar_lea.vmem [#allocation10], %s293
          %s295 = sadd.s32 %s29, %s30
          %s296 = smul.u32 4, %s295
          %298 = vsyncadd %s291, 0
          %s299 = smul.addr %s296, 8
          %s300 = scalar_lea.hbm %s2, %s299
          %s302 = sshll.u32 1, 14
          %s303 = sxor.u32 4294967295, %s302
          %s305 = sld [smem:[#allocation0]]
          %s306 = sadd.s32 2, %s305
          %s308 = sshll.u32 7, 26
          %s309 = sxor.u32 4294967295, %s308
          %s310 = sand.u32 0, %s309
          %s311 = sshll.u32 %s306, 26
          %s312 = sor.u32 %s310, %s311
          %s313 = sshll.u32 %s300, 4
          %s314 = int_to_ptr.hbm [resolvable:$true] %s313
          %s315 = sshll.u32 %s294, 4
          %s316 = int_to_ptr.vmem [resolvable:$true] %s315
          %322 = sst [smem:[#allocation19]] 1024
          %s323 = scalar_lea.smem [#allocation19], 1
          %324 = sst [smem:[%s323]] 512
          %s325 = scalar_lea.smem [#allocation19], 2
          %326 = sst [smem:[%s325]] 4
          %s327 = scalar_lea.smem [#allocation19], 3
          %328 = sst [smem:[%s327]] 128
          %s329 = scalar_lea.smem [#allocation19], 4
          %330 = sst [smem:[%s329]] 128
          %s331 = scalar_lea.smem [#allocation19], 5
          %332 = sst [smem:[%s331]] 8
          %334 = dma.general %s314, 1536, %s316, %s291, [#allocation18], [#allocation19], %s312, 0
        $region28: #{tpu_custom_call.1} parent=15 // pred_fallthru
          _
        // Predicated region
        $region29: #{tpu_custom_call.1} parent=15 // pred_check
          %p335 = pneg %p140
        $region30: #{tpu_custom_call.1} parent=15 // pred_check_branch
          %337 = sbr.rel (%p335) target = $region32
        $region31: #{tpu_custom_call.1} parent=15 // pred_region
          %s338 = sand.u32 %s130, 1
          %s339 = scalar_lea.sflag [#allocation12], %s338
          %s340 = sand.u32 %s130, 1
          %s341 = smul.addr %s340, 32
          %s342 = scalar_lea.vmem [#allocation11], %s341
          %s343 = sadd.s32 %s29, %s30
          %s344 = smul.u32 4, %s343
          %346 = vsyncadd %s339, 0
          %s347 = smul.addr %s344, 8
          %s348 = scalar_lea.hbm %s3, %s347
          %s349 = sshll.u32 %s348, 4
          %s350 = int_to_ptr.hbm [resolvable:$true] %s349
          %s351 = sshll.u32 %s342, 4
          %s352 = int_to_ptr.vmem [resolvable:$true] %s351
          %357 = dma.hbm_to_vmem [thread:$0]  %s350, 512, %s352, %s339, 128, 128, 8
        $region32: #{tpu_custom_call.1} parent=15 // pred_fallthru
          _
      $region16: #{tpu_custom_call.1} parent=5 // pred_fallthru
        _
      %p358 = scmp.le.s32.totalorder 1, %s22
      %p359 = scmp.lt.s32.totalorder %s22, 3
      %p360 = pnand %p358, %p359
      %p361 = pneg %p360
      // Predicated region
      $region33: #{tpu_custom_call.1} parent=5 // pred_check
        _
      $region34: #{tpu_custom_call.1} parent=5 // pred_check_branch
        %363 = sbr.rel (%p360) target = $region36
      $region35: #{tpu_custom_call.1} parent=5 // pred_region
        %s364 = ssub.s32 %s22, 1
        %s365 = sand.u32 %s49, 1
        %s366 = scalar_lea.sflag [#allocation6], %s365
        %s367 = sand.u32 %s49, 1
        %s368 = smul.addr %s367, 96
        %s369 = scalar_lea.vmem [#allocation5], %s368
        // Predicated region
        $region37: #{tpu_custom_call.1} parent=35 // pred_check
          %p370 = pneg %p62
        $region38: #{tpu_custom_call.1} parent=35 // pred_check_branch
          %372 = sbr.rel (%p370) target = $region40
        $region39: #{tpu_custom_call.1} parent=35 // pred_region
          %374 = dma.done %s366, 1536
        $region40: #{tpu_custom_call.1} parent=35 // pred_fallthru
          _
        %s375 = sand.u32 %s27, 1
        %s376 = scalar_lea.sflag [#allocation9], %s375
        %s377 = sand.u32 %s77, 1
        %s378 = smul.addr %s377, 96
        %s379 = scalar_lea.vmem [#allocation8], %s378
        // Predicated region
        $region41: #{tpu_custom_call.1} parent=35 // pred_check
          %p380 = pneg %p90
        $region42: #{tpu_custom_call.1} parent=35 // pred_check_branch
          %382 = sbr.rel (%p380) target = $region44
        $region43: #{tpu_custom_call.1} parent=35 // pred_region
          %384 = dma.done %s376, 1536
        $region44: #{tpu_custom_call.1} parent=35 // pred_fallthru
          _
        %s385 = sand.u32 %s27, 1
        %s386 = scalar_lea.sflag [#allocation9], %s385
        %s387 = sand.u32 %s105, 1
        %s388 = smul.addr %s387, 96
        %s389 = scalar_lea.vmem [#allocation10], %s388
        // Predicated region
        $region45: #{tpu_custom_call.1} parent=35 // pred_check
          %p390 = pneg %p118
        $region46: #{tpu_custom_call.1} parent=35 // pred_check_branch
          %392 = sbr.rel (%p390) target = $region48
        $region47: #{tpu_custom_call.1} parent=35 // pred_region
          %394 = dma.done %s386, 1536
        $region48: #{tpu_custom_call.1} parent=35 // pred_fallthru
          _
        %s395 = sand.u32 %s133, 1
        %s396 = scalar_lea.sflag [#allocation12], %s395
        %s397 = sand.u32 %s133, 1
        %s398 = smul.addr %s397, 32
        %s399 = scalar_lea.vmem [#allocation11], %s398
        // Predicated region
        $region49: #{tpu_custom_call.1} parent=35 // pred_check
          %p400 = pneg %p146
        $region50: #{tpu_custom_call.1} parent=35 // pred_check_branch
          %402 = sbr.rel (%p400) target = $region52
        $region51: #{tpu_custom_call.1} parent=35 // pred_region
          %404 = dma.done %s396, 512
        $region52: #{tpu_custom_call.1} parent=35 // pred_fallthru
          _
        %s405 = sand.u32 %s49, 1
        %s406 = scalar_lea.sflag [#allocation6], %s405
        %s407 = sand.u32 %s49, 1
        %s408 = smul.addr %s407, 96
        %s409 = scalar_lea.vmem [#allocation5], %s408
        %p410 = pneg %p62
        %p411 = pneg %p59
        %s412 = sand.u32 %s27, 1
        %s413 = scalar_lea.sflag [#allocation9], %s412
        %s414 = sand.u32 %s77, 1
        %s415 = smul.addr %s414, 96
        %s416 = scalar_lea.vmem [#allocation8], %s415
        %p417 = pneg %p90
        %p418 = pneg %p87
        %s419 = sand.u32 %s27, 1
        %s420 = scalar_lea.sflag [#allocation9], %s419
        %s421 = sand.u32 %s105, 1
        %s422 = smul.addr %s421, 96
        %s423 = scalar_lea.vmem [#allocation10], %s422
        %p424 = pneg %p118
        %p425 = pneg %p115
        %s426 = sand.u32 %s133, 1
        %s427 = scalar_lea.sflag [#allocation12], %s426
        %s428 = sand.u32 %s133, 1
        %s429 = smul.addr %s428, 32
        %s430 = scalar_lea.vmem [#allocation11], %s429
        %p431 = pneg %p146
        %p432 = pneg %p143
        %p433 = pneg %p172
        %p434 = pneg %p169
        %s435 = sand.u32 %s159, 1
        %s436 = scalar_lea.sflag [#allocation7], %s435
        %s437 = sand.u32 %s159, 1
        %s438 = smul.addr %s437, 8
        %s439 = scalar_lea.vmem [#allocation13], %s438
        %s440 = sadd.s32 %s31, %s32
        %s441 = smul.u32 4, %s440
        %s442 = sadd.s32 %s31, %s32
        %s443 = smul.u32 4, %s442
        %s444 = sadd.s32 %s31, %s32
        %s445 = smul.u32 4, %s444
        %s446 = sadd.s32 %s31, %s32
        %s447 = smul.u32 4, %s446
        %p448 = scmp.eq.s32.totalorder %s32, 0
        // Predicated region
        $region53: #{tpu_custom_call.1} parent=35 // pred_check
          %p449 = pneg %p448
        $region54: #{tpu_custom_call.1} parent=35 // pred_check_branch
          %451 = sbr.rel (%p449) target = $region56
        $region55: #{tpu_custom_call.1} parent=35 // pred_region
          %452 = vst [vmem:[#allocation2] sm:$0xff] 0.0
          %453 = vst [vmem:[#allocation2 + $0x8] sm:$0xff] 0.0
          %454 = vst [vmem:[#allocation2 + $0x10] sm:$0xff] 0.0
          %455 = vst [vmem:[#allocation2 + $0x18] sm:$0xff] 0.0
          %456 = vst [vmem:[#allocation3] sm:$0xff] 0.0
          %457 = vst [vmem:[#allocation3 + $0x8] sm:$0xff] 0.0
          %458 = vst [vmem:[#allocation3 + $0x10] sm:$0xff] 0.0
          %459 = vst [vmem:[#allocation3 + $0x18] sm:$0xff] 0.0
          %460 = vst [vmem:[#allocation4] sm:$0xff] 0.0
          %461 = vst [vmem:[#allocation4 + $0x8] sm:$0xff] 0.0
          %462 = vst [vmem:[#allocation4 + $0x10] sm:$0xff] 0.0
          %463 = vst [vmem:[#allocation4 + $0x18] sm:$0xff] 0.0
        $region56: #{tpu_custom_call.1} parent=35 // pred_fallthru
          _
        %v464 = vld [vmem:[%s399] sm:$0xff]
        %v465 = vld [vmem:[%s399 + $0x8] sm:$0xff]
        %v466 = vld [vmem:[%s399 + $0x10] sm:$0xff]
        %v467 = vld [vmem:[%s399 + $0x18] sm:$0xff]
        %v468 = vld [vmem:[%s369] sm:$0xff]
        %v469 = vld [vmem:[%s369 + $0x8] sm:$0xff]
        %v470 = vld [vmem:[%s369 + $0x10] sm:$0xff]
        %v471 = vld [vmem:[%s369 + $0x18] sm:$0xff]
        %s472 = scalar_lea.vmem %s369, 32 [#allocation5]
        %v473 = vld [vmem:[%s472] sm:$0xff]
        %v474 = vld [vmem:[%s472 + $0x8] sm:$0xff]
        %v475 = vld [vmem:[%s472 + $0x10] sm:$0xff]
        %v476 = vld [vmem:[%s472 + $0x18] sm:$0xff]
        %s477 = scalar_lea.vmem %s369, 64 [#allocation5]
        %v478 = vld [vmem:[%s477] sm:$0xff]
        %v479 = vld [vmem:[%s477 + $0x8] sm:$0xff]
        %v480 = vld [vmem:[%s477 + $0x10] sm:$0xff]
        %v481 = vld [vmem:[%s477 + $0x18] sm:$0xff]
        %v482 = vld [vmem:[%s379] sm:$0xff]
        %v483 = vld [vmem:[%s379 + $0x8] sm:$0xff]
        %v484 = vld [vmem:[%s379 + $0x10] sm:$0xff]
        %v485 = vld [vmem:[%s379 + $0x18] sm:$0xff]
        %s486 = scalar_lea.vmem %s379, 32 [#allocation8]
        %v487 = vld [vmem:[%s486] sm:$0xff]
        %v488 = vld [vmem:[%s486 + $0x8] sm:$0xff]
        %v489 = vld [vmem:[%s486 + $0x10] sm:$0xff]
        %v490 = vld [vmem:[%s486 + $0x18] sm:$0xff]
        %s491 = scalar_lea.vmem %s379, 64 [#allocation8]
        %v492 = vld [vmem:[%s491] sm:$0xff]
        %v493 = vld [vmem:[%s491 + $0x8] sm:$0xff]
        %v494 = vld [vmem:[%s491 + $0x10] sm:$0xff]
        %v495 = vld [vmem:[%s491 + $0x18] sm:$0xff]
        %v496 = vld [vmem:[%s389] sm:$0xff]
        %v497 = vld [vmem:[%s389 + $0x8] sm:$0xff]
        %v498 = vld [vmem:[%s389 + $0x10] sm:$0xff]
        %v499 = vld [vmem:[%s389 + $0x18] sm:$0xff]
        %s500 = scalar_lea.vmem %s389, 32 [#allocation10]
        %v501 = vld [vmem:[%s500] sm:$0xff]
        %v502 = vld [vmem:[%s500 + $0x8] sm:$0xff]
        %v503 = vld [vmem:[%s500 + $0x10] sm:$0xff]
        %v504 = vld [vmem:[%s500 + $0x18] sm:$0xff]
        %s505 = scalar_lea.vmem %s389, 64 [#allocation10]
        %v506 = vld [vmem:[%s505] sm:$0xff]
        %v507 = vld [vmem:[%s505 + $0x8] sm:$0xff]
        %v508 = vld [vmem:[%s505 + $0x10] sm:$0xff]
        %v509 = vld [vmem:[%s505 + $0x18] sm:$0xff]
        %v510 = vmul.f32 %v482, %v482
        %v511 = vmul.f32 %v483, %v483
        %v512 = vmul.f32 %v484, %v484
        %v513 = vmul.f32 %v485, %v485
        %v514 = vmul.f32 %v487, %v487
        %v515 = vmul.f32 %v488, %v488
        %v516 = vmul.f32 %v489, %v489
        %v517 = vmul.f32 %v490, %v490
        %v518 = vadd.f32 %v510, %v514
        %v519 = vadd.f32 %v511, %v515
        %v520 = vadd.f32 %v512, %v516
        %v521 = vadd.f32 %v513, %v517
        %v522 = vmul.f32 %v492, %v492
        %v523 = vmul.f32 %v493, %v493
        %v524 = vmul.f32 %v494, %v494
        %v525 = vmul.f32 %v495, %v495
        %v526 = vadd.f32 %v518, %v522
        %v527 = vadd.f32 %v519, %v523
        %v528 = vadd.f32 %v520, %v524
        %v529 = vadd.f32 %v521, %v525
        %v530 = vmax.f32 %v526, 1e-24
        %v531 = vmax.f32 %v527, 1e-24
        %v532 = vmax.f32 %v528, 1e-24
        %v533 = vmax.f32 %v529, 1e-24
        %v534 = vrsqrt.pop %v530
        %v535 = vmul.f32 %v534, %v530
        %v536 = vmul.f32 %v535, %v534
        %v537 = vmul.f32 0.5, %v536
        %v538 = vsub.f32 1.5, %v537
        %v539 = vmul.f32 %v534, %v538
        %vm540 = vweird.f32 %v530
        %vm541 = vweird.f32 %v534
        %vm542 = vmor %vm540, %vm541
        %v543 = vsel %vm542, %v534, %v539
        %v544 = vrsqrt.pop %v531
        %v545 = vmul.f32 %v544, %v531
        %v546 = vmul.f32 %v545, %v544
        %v547 = vmul.f32 0.5, %v546
        %v548 = vsub.f32 1.5, %v547
        %v549 = vmul.f32 %v544, %v548
        %vm550 = vweird.f32 %v531
        %vm551 = vweird.f32 %v544
        %vm552 = vmor %vm550, %vm551
        %v553 = vsel %vm552, %v544, %v549
        %v554 = vrsqrt.pop %v532
        %v555 = vmul.f32 %v554, %v532
        %v556 = vmul.f32 %v555, %v554
        %v557 = vmul.f32 0.5, %v556
        %v558 = vsub.f32 1.5, %v557
        %v559 = vmul.f32 %v554, %v558
        %vm560 = vweird.f32 %v532
        %vm561 = vweird.f32 %v554
        %vm562 = vmor %vm560, %vm561
        %v563 = vsel %vm562, %v554, %v559
        %v564 = vrsqrt.pop %v533
        %v565 = vmul.f32 %v564, %v533
        %v566 = vmul.f32 %v565, %v564
        %v567 = vmul.f32 0.5, %v566
        %v568 = vsub.f32 1.5, %v567
        %v569 = vmul.f32 %v564, %v568
        %vm570 = vweird.f32 %v533
        %vm571 = vweird.f32 %v564
        %vm572 = vmor %vm570, %vm571
        %v573 = vsel %vm572, %v564, %v569
        %v574 = vmul.f32 %v482, %v543
        %v575 = vmul.f32 %v483, %v553
        %v576 = vmul.f32 %v484, %v563
        %v577 = vmul.f32 %v485, %v573
        %v578 = vsub.f32 %v468, %v574
        %v579 = vsub.f32 %v469, %v575
        %v580 = vsub.f32 %v470, %v576
        %v581 = vsub.f32 %v471, %v577
        %v582 = vmul.f32 %v487, %v543
        %v583 = vmul.f32 %v488, %v553
        %v584 = vmul.f32 %v489, %v563
        %v585 = vmul.f32 %v490, %v573
        %v586 = vsub.f32 %v473, %v582
        %v587 = vsub.f32 %v474, %v583
        %v588 = vsub.f32 %v475, %v584
        %v589 = vsub.f32 %v476, %v585
        %v590 = vmul.f32 %v492, %v543
        %v591 = vmul.f32 %v493, %v553
        %v592 = vmul.f32 %v494, %v563
        %v593 = vmul.f32 %v495, %v573
        %v594 = vsub.f32 %v478, %v590
        %v595 = vsub.f32 %v479, %v591
        %v596 = vsub.f32 %v480, %v592
        %v597 = vsub.f32 %v481, %v593
        %v598 = vld [vmem:[#allocation2] sm:$0xff]
        %v599 = vld [vmem:[#allocation2 + $0x8] sm:$0xff]
        %v600 = vld [vmem:[#allocation2 + $0x10] sm:$0xff]
        %v601 = vld [vmem:[#allocation2 + $0x18] sm:$0xff]
        %v602 = vmul.f32 %v578, %v578
        %v603 = vmul.f32 %v579, %v579
        %v604 = vmul.f32 %v580, %v580
        %v605 = vmul.f32 %v581, %v581
        %v606 = vmul.f32 %v586, %v586
        %v607 = vmul.f32 %v587, %v587
        %v608 = vmul.f32 %v588, %v588
        %v609 = vmul.f32 %v589, %v589
        %v610 = vadd.f32 %v602, %v606
        %v611 = vadd.f32 %v603, %v607
        %v612 = vadd.f32 %v604, %v608
        %v613 = vadd.f32 %v605, %v609
        %v614 = vmul.f32 %v594, %v594
        %v615 = vmul.f32 %v595, %v595
        %v616 = vmul.f32 %v596, %v596
        %v617 = vmul.f32 %v597, %v597
        %v618 = vadd.f32 %v610, %v614
        %v619 = vadd.f32 %v611, %v615
        %v620 = vadd.f32 %v612, %v616
        %v621 = vadd.f32 %v613, %v617
        %v622 = vmul.f32 %v464, %v618
        %v623 = vmul.f32 %v465, %v619
        %v624 = vmul.f32 %v466, %v620
        %v625 = vmul.f32 %v467, %v621
        %v626 = vadd.f32 %v598, %v622
        %v627 = vadd.f32 %v599, %v623
        %v628 = vadd.f32 %v600, %v624
        %v629 = vadd.f32 %v601, %v625
        %630 = vst [vmem:[#allocation2] sm:$0xff] %v626
        %631 = vst [vmem:[#allocation2 + $0x8] sm:$0xff] %v627
        %632 = vst [vmem:[#allocation2 + $0x10] sm:$0xff] %v628
        %633 = vst [vmem:[#allocation2 + $0x18] sm:$0xff] %v629
        %v634 = vld [vmem:[#allocation3] sm:$0xff]
        %v635 = vld [vmem:[#allocation3 + $0x8] sm:$0xff]
        %v636 = vld [vmem:[#allocation3 + $0x10] sm:$0xff]
        %v637 = vld [vmem:[#allocation3 + $0x18] sm:$0xff]
        %v638 = vsub.f32 %v468, %v496
        %v639 = vsub.f32 %v469, %v497
        %v640 = vsub.f32 %v470, %v498
        %v641 = vsub.f32 %v471, %v499
        %v642 = vand.u32 2147483647, %v638
        %v643 = vand.u32 2147483647, %v639
        %v644 = vand.u32 2147483647, %v640
        %v645 = vand.u32 2147483647, %v641
        %v646 = vsub.f32 %v473, %v501
        %v647 = vsub.f32 %v474, %v502
        %v648 = vsub.f32 %v475, %v503
        %v649 = vsub.f32 %v476, %v504
        %v650 = vand.u32 2147483647, %v646
        %v651 = vand.u32 2147483647, %v647
        %v652 = vand.u32 2147483647, %v648
        %v653 = vand.u32 2147483647, %v649
        %v654 = vadd.f32 %v642, %v650
        %v655 = vadd.f32 %v643, %v651
        %v656 = vadd.f32 %v644, %v652
        %v657 = vadd.f32 %v645, %v653
        %v658 = vsub.f32 %v478, %v506
        %v659 = vsub.f32 %v479, %v507
        %v660 = vsub.f32 %v480, %v508
        %v661 = vsub.f32 %v481, %v509
        %v662 = vand.u32 2147483647, %v658
        %v663 = vand.u32 2147483647, %v659
        %v664 = vand.u32 2147483647, %v660
        %v665 = vand.u32 2147483647, %v661
        %v666 = vadd.f32 %v654, %v662
        %v667 = vadd.f32 %v655, %v663
        %v668 = vadd.f32 %v656, %v664
        %v669 = vadd.f32 %v657, %v665
        %v670 = vmul.f32 %v464, %v666
        %v671 = vmul.f32 %v465, %v667
        %v672 = vmul.f32 %v466, %v668
        %v673 = vmul.f32 %v467, %v669
        %v674 = vadd.f32 %v634, %v670
        %v675 = vadd.f32 %v635, %v671
        %v676 = vadd.f32 %v636, %v672
        %v677 = vadd.f32 %v637, %v673
        %678 = vst [vmem:[#allocation3] sm:$0xff] %v674
        %679 = vst [vmem:[#allocation3 + $0x8] sm:$0xff] %v675
        %680 = vst [vmem:[#allocation3 + $0x10] sm:$0xff] %v676
        %681 = vst [vmem:[#allocation3 + $0x18] sm:$0xff] %v677
        %v682 = vld [vmem:[#allocation4] sm:$0xff]
        %v683 = vld [vmem:[#allocation4 + $0x8] sm:$0xff]
        %v684 = vld [vmem:[#allocation4 + $0x10] sm:$0xff]
        %v685 = vld [vmem:[#allocation4 + $0x18] sm:$0xff]
        %v686 = vadd.f32 %v682, %v464
        %v687 = vadd.f32 %v683, %v465
        %v688 = vadd.f32 %v684, %v466
        %v689 = vadd.f32 %v685, %v467
        %690 = vst [vmem:[#allocation4] sm:$0xff] %v686
        %691 = vst [vmem:[#allocation4 + $0x8] sm:$0xff] %v687
        %692 = vst [vmem:[#allocation4 + $0x10] sm:$0xff] %v688
        %693 = vst [vmem:[#allocation4 + $0x18] sm:$0xff] %v689
        // Predicated region
        $region57: #{tpu_custom_call.1} parent=35 // pred_check
          %p694 = pneg %p448
        $region58: #{tpu_custom_call.1} parent=35 // pred_check_branch
          %696 = sbr.rel (%p694) target = $region60
        $region59: #{tpu_custom_call.1} parent=35 // pred_region
          %v697 = vlaneseq
          %v698 = vand.u32 %v697, 127
          %v699 = vld [vmem:[#allocation2] sm:$0xff]
          %v700 = vld [vmem:[#allocation2 + $0x8] sm:$0xff]
          %v701 = vld [vmem:[#allocation2 + $0x10] sm:$0xff]
          %v702 = vld [vmem:[#allocation2 + $0x18] sm:$0xff]
          %v703 = vadd.f32 %v699, %v700
          %v704 = vadd.f32 %v703, %v701
          %v705 = vadd.f32 %v704, %v702
          %706 = vadd.xlane.f32.xlu0 %v705
          %v707 = vpop.xlane.xlu0 %706
          %v708 = vrot.slane %v707, 4
          %v709 = vadd.f32 %v707, %v708
          %v710 = vrot.slane %v709, 2
          %v711 = vadd.f32 %v709, %v710
          %v712 = vrot.slane %v711, 1
          %v713 = vadd.f32 %v711, %v712
          %s714 = vtos %v713
          %v715 = vld [vmem:[#allocation3] sm:$0xff]
          %v716 = vld [vmem:[#allocation3 + $0x8] sm:$0xff]
          %v717 = vld [vmem:[#allocation3 + $0x10] sm:$0xff]
          %v718 = vld [vmem:[#allocation3 + $0x18] sm:$0xff]
          %v719 = vadd.f32 %v715, %v716
          %v720 = vadd.f32 %v719, %v717
          %v721 = vadd.f32 %v720, %v718
          %722 = vadd.xlane.f32.xlu0 %v721
          %v723 = vpop.xlane.xlu0 %722
          %v724 = vrot.slane %v723, 4
          %v725 = vadd.f32 %v723, %v724
          %v726 = vrot.slane %v725, 2
          %v727 = vadd.f32 %v725, %v726
          %v728 = vrot.slane %v727, 1
          %v729 = vadd.f32 %v727, %v728
          %s730 = vtos %v729
          %v731 = vld [vmem:[#allocation4] sm:$0xff]
          %v732 = vld [vmem:[#allocation4 + $0x8] sm:$0xff]
          %v733 = vld [vmem:[#allocation4 + $0x10] sm:$0xff]
          %v734 = vld [vmem:[#allocation4 + $0x18] sm:$0xff]
          %v735 = vadd.f32 %v731, %v732
          %v736 = vadd.f32 %v735, %v733
          %v737 = vadd.f32 %v736, %v734
          %738 = vadd.xlane.f32.xlu0 %v737
          %v739 = vpop.xlane.xlu0 %738
          %v740 = vrot.slane %v739, 4
          %v741 = vadd.f32 %v739, %v740
          %v742 = vrot.slane %v741, 2
          %v743 = vadd.f32 %v741, %v742
          %v744 = vrot.slane %v743, 1
          %v745 = vadd.f32 %v743, %v744
          %s746 = vtos %v745
          %vm747 = vcmp.eq.s32.totalorder %v698, 0
          %vm748 = vcmp.eq.s32.totalorder %v698, 1
          %vm749 = vcmp.eq.s32.totalorder %v698, 2
          %v750 = vstv %s746
          %v751 = vsel %vm749, %v750, 0.0
          %v752 = vstv %s730
          %v753 = vsel %vm748, %v752, %v751
          %v754 = vstv %s714
          %v755 = vsel %vm747, %v754, %v753
          %756 = vst [vmem:[%s439] sm:$0xff] %v755
        $region60: #{tpu_custom_call.1} parent=35 // pred_fallthru
          _
        %s757 = sand.u32 %s159, 1
        %s758 = scalar_lea.sflag [#allocation7], %s757
        %s759 = sand.u32 %s159, 1
        %s760 = smul.addr %s759, 8
        %s761 = scalar_lea.vmem [#allocation13], %s760
        // Predicated region
        $region61: #{tpu_custom_call.1} parent=35 // pred_check
          %p762 = pneg %p169
        $region62: #{tpu_custom_call.1} parent=35 // pred_check_branch
          %764 = sbr.rel (%p762) target = $region64
        $region63: #{tpu_custom_call.1} parent=35 // pred_region
          %766 = vsyncadd %s758, 0
          %s767 = smul.addr %s31, 8
          %s768 = scalar_lea.hbm %s4, %s767
          %s770 = sshll.u32 %s761, 4
          %s771 = int_to_ptr.vmem [resolvable:$true] %s770
          %s772 = sshll.u32 %s768, 4
          %s773 = int_to_ptr.hbm [resolvable:$true] %s772
          %775 = dma.vmem_to_hbm [thread:$0]  %s771, 128, %s773, %s758
        $region64: #{tpu_custom_call.1} parent=35 // pred_fallthru
          _
      $region36: #{tpu_custom_call.1} parent=5 // pred_fallthru
        _
      %p776 = scmp.le.s32.totalorder 2, %s22
      // Predicated region
      $region65: #{tpu_custom_call.1} parent=5 // pred_check
        %p777 = pneg %p776
      $region66: #{tpu_custom_call.1} parent=5 // pred_check_branch
        %779 = sbr.rel (%p777) target = $region68
      $region67: #{tpu_custom_call.1} parent=5 // pred_region
        %s780 = ssub.s32 %s22, 2
        // Predicated region
        $region69: #{tpu_custom_call.1} parent=67 // pred_check
          %p781 = pneg %p175
        $region70: #{tpu_custom_call.1} parent=67 // pred_check_branch
          %783 = sbr.rel (%p781) target = $region72
        $region71: #{tpu_custom_call.1} parent=67 // pred_region
          %s784 = sand.u32 %s160, 1
          %s785 = scalar_lea.sflag [#allocation7], %s784
          %s786 = sand.u32 %s160, 1
          %s787 = smul.addr %s786, 8
          %s788 = scalar_lea.vmem [#allocation13], %s787
          %790 = dma.done %s785, 128
        $region72: #{tpu_custom_call.1} parent=67 // pred_fallthru
          _
      $region68: #{tpu_custom_call.1} parent=5 // pred_fallthru
        _
    $region6: #{tpu_custom_call.1} parent=1 // loop_footer
      %s26 = sadd.s32 1, %s22
    $region7: #{tpu_custom_call.1} parent=1 // loop_footer_branch
      %21 = sbr.rel target = $region3
    $region8: #{tpu_custom_call.1} parent=1 // loop_exit
      _
    %791 = vsyncpa [#allocation6], 1
    %s792 = scalar_lea.sflag [#allocation6], 1
    %793 = vsyncpa %s792, 1
    %794 = vsyncpa [#allocation9], 1
    %s795 = scalar_lea.sflag [#allocation9], 1
    %796 = vsyncpa %s795, 1
    %797 = vsyncpa [#allocation12], 1
    %s798 = scalar_lea.sflag [#allocation12], 1
    %799 = vsyncpa %s798, 1
    %800 = vsyncpa [#allocation7], 1
    %s801 = scalar_lea.sflag [#allocation7], 1
    %802 = vsyncpa %s801, 1

</llo_original>
